<compile_context>
chip_gen: v7x
topology: tpu7x:2x2x1
jax: 0.10.0
libtpu: 0.0.40
codegen_flags: <defaults>
</compile_context>

<pallas_src>
import functools
import math

import jax
import jax.numpy as jnp
from jax.experimental import pallas as pl
from jax.experimental.pallas import tpu as pltpu


def _round_up(v, m):
    return -(-v // m) * m


def mymodel_kernel(x_ref, w1_ref, b1_ref, w2_ref, gw_ref, c0_ref, out_ref):
    f32 = jnp.float32
    TB = x_ref.shape[0]          # batch tile
    D = gw_ref.shape[-1]         # num_out_dim
    scale = 1.0 / math.sqrt(D)

    # --- fused modality projections (block-diagonal weight) + ReLU -> [TB, 3D]
    x = x_ref[...].astype(f32)
    h = jnp.dot(x, w1_ref[...], preferred_element_type=f32) + b1_ref[...]
    h = jnp.maximum(h, 0.0)

    # --- all 9 token projections in ONE matmul --------------------------------
    # W2 is per-token block-diagonal; column layout [Q0|K0|V0 | Q1|K1|V1 | Q2|K2|V2]
    qkv = jnp.dot(h, w2_ref[...], preferred_element_type=f32)        # [TB, 9D]
    q = [qkv[:, (3 * i + 0) * D:(3 * i + 1) * D] for i in range(3)]
    k = [qkv[:, (3 * i + 1) * D:(3 * i + 2) * D] for i in range(3)]
    v = [qkv[:, (3 * i + 2) * D:(3 * i + 3) * D] for i in range(3)]

    # --- attention scores: direct per-pair lane reductions (no concat/split) --
    s = [[jnp.sum(q[i] * k[j], axis=-1, keepdims=True) * scale
          for j in range(3)] for i in range(3)]

    # --- softmax over j per query token i; beta_j = sum_i alpha_ij ------------
    beta = [jnp.zeros((TB, 1), f32) for _ in range(3)]
    for i in range(3):
        m = jnp.maximum(s[i][0], jnp.maximum(s[i][1], s[i][2]))
        e = [jnp.exp(s[i][j] - m) for j in range(3)]
        inv = pl.reciprocal(e[0] + e[1] + e[2], approx=False)
        for j in range(3):
            beta[j] = beta[j] + e[j] * inv

    # context.sum(dim=1) == sum_j beta_j * V_j
    ctx = beta[0] * v[0] + beta[1] * v[1] + beta[2] * v[2]            # [TB, D]

    # --- LayerNorm (eps=1e-5, biased variance) with the final fc folded in ----
    #   out = rstd * sum_d((ctx_d - mean) * ln_g_d * fc_w_d) + (ln_b @ fc_w + fc_b)
    mean = jnp.mean(ctx, axis=-1, keepdims=True)
    c = ctx - mean
    var = jnp.mean(c * c, axis=-1, keepdims=True)
    rstd = jax.lax.rsqrt(var + 1e-5)
    proj = jnp.sum(c * gw_ref[...], axis=-1, keepdims=True)           # [TB, 1]
    out_ref[...] = (rstd * proj + c0_ref[...]).astype(out_ref.dtype)


def pack_params(params):
    """One-time weight packing for the fused kernel (do NOT call per-forward)."""
    D = params["wq"].shape[0]
    dp_len = params["dpfc_w"].shape[1]
    maccs_len = params["maccsfc_w"].shape[1]
    ecfp4_len = params["ecfp4fc_w"].shape[1]
    in_len = dp_len + maccs_len + ecfp4_len
    pad_in = _round_up(in_len, 128)

    # block-diagonal fused modality projection: [pad_in, 3D]
    w1 = jnp.zeros((pad_in, 3 * D), jnp.float32)
    w1 = w1.at[0:dp_len, 0:D].set(params["dpfc_w"].T)
    w1 = w1.at[dp_len:dp_len + maccs_len, D:2 * D].set(params["maccsfc_w"].T)
    w1 = w1.at[dp_len + maccs_len:in_len, 2 * D:3 * D].set(params["ecfp4fc_w"].T)
    b1 = jnp.concatenate([params["dpfc_b"], params["maccsfc_b"],
                          params["ecfp4fc_b"]]).reshape(1, 3 * D)

    # per-token block-diagonal Q|K|V weight: [3D, 9D]
    wqkv = jnp.concatenate([params["wq"].T, params["wk"].T, params["wv"].T],
                           axis=1)                                    # [D, 3D]
    w2 = jnp.zeros((3 * D, 9 * D), jnp.float32)
    for t in range(3):
        w2 = w2.at[t * D:(t + 1) * D, 3 * t * D:3 * (t + 1) * D].set(wqkv)

    # LayerNorm affine folded with the final fc
    fc_w = params["fc_w"].reshape(D).astype(jnp.float32)
    gw = (params["ln_g"] * fc_w).reshape(1, D).astype(jnp.float32)
    c0 = (jnp.dot(params["ln_b"], fc_w) + params["fc_b"][0]).reshape(1, 1)
    return {"w1": w1, "b1": b1, "w2": w2, "gw": gw,
            "c0": c0.astype(jnp.float32)}


def _choose_tb(batch, block_b):
    """Pick (tile, padded_batch). Keeps >= 2 blocks when batch allows (v7x 2 TCs)."""
    assert block_b >= 128 and block_b % 128 == 0
    b16 = _round_up(batch, 16)               # bf16 sublane packing
    if b16 <= 128:
        return b16, b16
    half = max(128, _round_up((batch + 1) // 2, 128))
    tb = min(block_b, half)
    return tb, _round_up(batch, tb)


@functools.partial(jax.jit, static_argnames=("block_b", "input_dtype"))
def mymodel_forward(dp, maccs, ecfp4, packed, *, block_b=512,
                    input_dtype=jnp.bfloat16):
    """Pallas forward for MyModel (eval mode: dropout == identity).

    `packed` comes from pack_params() and is computed once, outside this call.
    """
    B = dp.shape[0]
    in_len = dp.shape[1] + maccs.shape[1] + ecfp4.shape[1]
    w1, b1, w2, gw, c0 = (packed["w1"], packed["b1"], packed["w2"],
                          packed["gw"], packed["c0"])
    pad_in = w1.shape[0]
    D = gw.shape[1]

    # fused, lane-dense input stream (bf16: fingerprints are 0/1 so exact),
    # zero-padded on features and batch; accumulation stays f32 in the kernel.
    x = jnp.concatenate([dp, maccs, ecfp4], axis=1).astype(input_dtype)
    x = jnp.pad(x, ((0, 0), (0, pad_in - in_len)))
    TB, B_pad = _choose_tb(B, block_b)
    x = jnp.pad(x, ((0, B_pad - B), (0, 0)))
    nblk = B_pad // TB

    out = pl.pallas_call(
        mymodel_kernel,
        out_shape=jax.ShapeDtypeStruct((B_pad, 1), jnp.float32),
        grid=(nblk,),
        in_specs=[
            pl.BlockSpec((TB, pad_in), lambda i: (i, 0)),      # activations per block
            pl.BlockSpec((pad_in, 3 * D), lambda i: (0, 0)),   # resident weights
            pl.BlockSpec((1, 3 * D), lambda i: (0, 0)),
            pl.BlockSpec((3 * D, 9 * D), lambda i: (0, 0)),
            pl.BlockSpec((1, D), lambda i: (0, 0)),
            pl.BlockSpec((1, 1), lambda i: (0, 0)),
        ],
        out_specs=pl.BlockSpec((TB, 1), lambda i: (i, 0)),
        compiler_params=pltpu.CompilerParams(
            dimension_semantics=("parallel",)),
    )(x, w1, b1, w2, gw, c0)

    return out[:B]


def mymodel_reference(dp, maccs, ecfp4, p):
    """Pure-JAX reference mirroring the PyTorch forward (eval mode)."""
    out_dp = jax.nn.relu(dp @ p["dpfc_w"].T + p["dpfc_b"])
    out_m = jax.nn.relu(maccs @ p["maccsfc_w"].T + p["maccsfc_b"])
    out_e = jax.nn.relu(ecfp4 @ p["ecfp4fc_w"].T + p["ecfp4fc_b"])
    com = jnp.stack((out_dp, out_m, out_e), axis=1)              # [B, 3, D]
    Q = com @ p["wq"].T
    K = com @ p["wk"].T
    V = com @ p["wv"].T
    scores = jnp.einsum("bid,bjd->bij", Q, K) / math.sqrt(K.shape[-1])
    alpha = jax.nn.softmax(scores, axis=-1)
    ctx = jnp.einsum("bij,bjd->bid", alpha, V).sum(axis=1)       # [B, D]
    mean = ctx.mean(-1, keepdims=True)
    var = ((ctx - mean) ** 2).mean(-1, keepdims=True)
    out_ln = (ctx - mean) / jnp.sqrt(var + 1e-5) * p["ln_g"] + p["ln_b"]
    return out_ln @ p["fc_w"].T + p["fc_b"]


if __name__ == "__main__":
    B = 2
    dp_len, maccs_len, ecfp4_len = 32, 16, 64
    D = 32  # num_out_dim

    key = jax.random.PRNGKey(0)
    ks = jax.random.split(key, 16)

    def w(k, shape, fan_in):
        return (jax.random.uniform(k, shape, jnp.float32, -1.0, 1.0)
                / math.sqrt(fan_in))

    params = {
        "dpfc_w":    w(ks[0], (D, dp_len), dp_len),
        "dpfc_b":    w(ks[1], (D,), dp_len),
        "maccsfc_w": w(ks[2], (D, maccs_len), maccs_len),
        "maccsfc_b": w(ks[3], (D,), maccs_len),
        "ecfp4fc_w": w(ks[4], (D, ecfp4_len), ecfp4_len),
        "ecfp4fc_b": w(ks[5], (D,), ecfp4_len),
        "wq":        w(ks[6], (D, D), D),
        "wk":        w(ks[7], (D, D), D),
        "wv":        w(ks[8], (D, D), D),
        "ln_g":      jnp.ones((D,), jnp.float32),
        "ln_b":      jnp.zeros((D,), jnp.float32),
        "fc_w":      w(ks[9], (1, D), D),
        "fc_b":      w(ks[10], (1,), D),
    }

    # Binary molecular fingerprints (0/1) — exact in the bf16 activation stream.
    dp = jax.random.bernoulli(ks[11], 0.3, (B, dp_len)).astype(jnp.float32)
    maccs = jax.random.bernoulli(ks[12], 0.3, (B, maccs_len)).astype(jnp.float32)
    ecfp4 = jax.random.bernoulli(ks[13], 0.3, (B, ecfp4_len)).astype(jnp.float32)

    packed = pack_params(params)   # one-time packing, outside the jitted forward

    out = jax.block_until_ready(mymodel_forward(dp, maccs, ecfp4, packed))
    ref = jax.block_until_ready(mymodel_reference(dp, maccs, ecfp4, params))
    assert out.shape == (B, 1)
    assert jnp.allclose(out, ref, atol=1e-4, rtol=1e-4), (out, ref)
    print("KERNEL_OK")
</pallas_src>

<mosaic_0001>
module attributes {stable_mosaic.version = 11 : i64} {
  func.func @mymodel_kernel(%arg0: i32, %arg1: memref<16x128xbf16, #tpu.memory_space<vmem>>, %arg2: memref<128x96xf32, #tpu.memory_space<vmem>>, %arg3: memref<1x96xf32, #tpu.memory_space<vmem>>, %arg4: memref<96x288xf32, #tpu.memory_space<vmem>>, %arg5: memref<1x32xf32, #tpu.memory_space<vmem>>, %arg6: memref<1x1xf32, #tpu.memory_space<vmem>>, %arg7: memref<16x1xf32, #tpu.memory_space<vmem>>) attributes {dimension_semantics = [#tpu.dimension_semantics<parallel>], iteration_bounds = array<i64: 1>, scalar_prefetch = 0 : i64, scratch_operands = 0 : i64, tpu.core_type = #tpu.core_type<tc>, window_params = [{transform_indices = @transform_0, window_bounds = array<i64: 16, 128>}, {pipeline_mode = #tpu.pipeline_mode<synchronous>, transform_indices = @transform_1, window_bounds = array<i64: 128, 96>}, {pipeline_mode = #tpu.pipeline_mode<synchronous>, transform_indices = @transform_2, window_bounds = array<i64: 1, 96>}, {pipeline_mode = #tpu.pipeline_mode<synchronous>, transform_indices = @transform_3, window_bounds = array<i64: 96, 288>}, {pipeline_mode = #tpu.pipeline_mode<synchronous>, transform_indices = @transform_4, window_bounds = array<i64: 1, 32>}, {pipeline_mode = #tpu.pipeline_mode<synchronous>, transform_indices = @transform_5, window_bounds = array<i64: 1, 1>}, {transform_indices = @transform_6, window_bounds = array<i64: 16, 1>}]} {
    %c0 = arith.constant 0 : index
    %c0_0 = arith.constant 0 : index
    %0 = vector.load %arg1[%c0, %c0_0] : memref<16x128xbf16, #tpu.memory_space<vmem>>, vector<16x128xbf16>
    %1 = arith.extf %0 : vector<16x128xbf16> to vector<16x128xf32>
    %c0_1 = arith.constant 0 : index
    %c0_2 = arith.constant 0 : index
    %2 = vector.load %arg2[%c0_1, %c0_2] : memref<128x96xf32, #tpu.memory_space<vmem>>, vector<128x96xf32>
    %cst = arith.constant dense<0.000000e+00> : vector<16x96xf32>
    %3 = tpu.matmul %1, %2, %cst {dimension_numbers = #tpu.dot_dimension_numbers<[1], [0], [0], [1], [0, 0, 1, 1], [], []>} : vector<16x128xf32>, vector<128x96xf32>, vector<16x96xf32> -> vector<16x96xf32>
    %c0_3 = arith.constant 0 : index
    %c0_4 = arith.constant 0 : index
    %4 = vector.load %arg3[%c0_3, %c0_4] : memref<1x96xf32, #tpu.memory_space<vmem>>, vector<1x96xf32>
    %5 = vector.broadcast %4 : vector<1x96xf32> to vector<16x96xf32>
    %6 = arith.addf %3, %5 : vector<16x96xf32>
    %cst_5 = arith.constant 0.000000e+00 : f32
    %7 = vector.broadcast %cst_5 : f32 to vector<16x96xf32>
    %8 = arith.maximumf %6, %7 : vector<16x96xf32>
    %c0_6 = arith.constant 0 : index
    %c0_7 = arith.constant 0 : index
    %9 = vector.load %arg4[%c0_6, %c0_7] : memref<96x288xf32, #tpu.memory_space<vmem>>, vector<96x288xf32>
    %cst_8 = arith.constant dense<0.000000e+00> : vector<16x288xf32>
    %10 = tpu.matmul %8, %9, %cst_8 {dimension_numbers = #tpu.dot_dimension_numbers<[1], [0], [0], [1], [0, 0, 1, 1], [], []>} : vector<16x96xf32>, vector<96x288xf32>, vector<16x288xf32> -> vector<16x288xf32>
    %11 = vector.extract_strided_slice %10 {offsets = [0, 0], sizes = [16, 32], strides = [1, 1]} : vector<16x288xf32> to vector<16x32xf32>
    %12 = vector.extract_strided_slice %10 {offsets = [0, 96], sizes = [16, 32], strides = [1, 1]} : vector<16x288xf32> to vector<16x32xf32>
    %13 = vector.extract_strided_slice %10 {offsets = [0, 192], sizes = [16, 32], strides = [1, 1]} : vector<16x288xf32> to vector<16x32xf32>
    %14 = vector.extract_strided_slice %10 {offsets = [0, 32], sizes = [16, 32], strides = [1, 1]} : vector<16x288xf32> to vector<16x32xf32>
    %15 = vector.extract_strided_slice %10 {offsets = [0, 128], sizes = [16, 32], strides = [1, 1]} : vector<16x288xf32> to vector<16x32xf32>
    %16 = vector.extract_strided_slice %10 {offsets = [0, 224], sizes = [16, 32], strides = [1, 1]} : vector<16x288xf32> to vector<16x32xf32>
    %17 = vector.extract_strided_slice %10 {offsets = [0, 64], sizes = [16, 32], strides = [1, 1]} : vector<16x288xf32> to vector<16x32xf32>
    %18 = vector.extract_strided_slice %10 {offsets = [0, 160], sizes = [16, 32], strides = [1, 1]} : vector<16x288xf32> to vector<16x32xf32>
    %19 = vector.extract_strided_slice %10 {offsets = [0, 256], sizes = [16, 32], strides = [1, 1]} : vector<16x288xf32> to vector<16x32xf32>
    %20 = arith.mulf %11, %14 : vector<16x32xf32>
    %cst_9 = arith.constant dense<0.000000e+00> : vector<16xf32>
    %21 = vector.multi_reduction <add>, %20, %cst_9 [1] : vector<16x32xf32> to vector<16xf32>
    %22 = vector.shape_cast %21 : vector<16xf32> to vector<16x1xf32>
    %cst_10 = arith.constant 0.176776692 : f32
    %23 = vector.broadcast %cst_10 : f32 to vector<16x1xf32>
    %24 = arith.mulf %22, %23 : vector<16x1xf32>
    %25 = arith.mulf %11, %15 : vector<16x32xf32>
    %cst_11 = arith.constant dense<0.000000e+00> : vector<16xf32>
    %26 = vector.multi_reduction <add>, %25, %cst_11 [1] : vector<16x32xf32> to vector<16xf32>
    %27 = vector.shape_cast %26 : vector<16xf32> to vector<16x1xf32>
    %cst_12 = arith.constant 0.176776692 : f32
    %28 = vector.broadcast %cst_12 : f32 to vector<16x1xf32>
    %29 = arith.mulf %27, %28 : vector<16x1xf32>
    %30 = arith.mulf %11, %16 : vector<16x32xf32>
    %cst_13 = arith.constant dense<0.000000e+00> : vector<16xf32>
    %31 = vector.multi_reduction <add>, %30, %cst_13 [1] : vector<16x32xf32> to vector<16xf32>
    %32 = vector.shape_cast %31 : vector<16xf32> to vector<16x1xf32>
    %cst_14 = arith.constant 0.176776692 : f32
    %33 = vector.broadcast %cst_14 : f32 to vector<16x1xf32>
    %34 = arith.mulf %32, %33 : vector<16x1xf32>
    %35 = arith.mulf %12, %14 : vector<16x32xf32>
    %cst_15 = arith.constant dense<0.000000e+00> : vector<16xf32>
    %36 = vector.multi_reduction <add>, %35, %cst_15 [1] : vector<16x32xf32> to vector<16xf32>
    %37 = vector.shape_cast %36 : vector<16xf32> to vector<16x1xf32>
    %cst_16 = arith.constant 0.176776692 : f32
    %38 = vector.broadcast %cst_16 : f32 to vector<16x1xf32>
    %39 = arith.mulf %37, %38 : vector<16x1xf32>
    %40 = arith.mulf %12, %15 : vector<16x32xf32>
    %cst_17 = arith.constant dense<0.000000e+00> : vector<16xf32>
    %41 = vector.multi_reduction <add>, %40, %cst_17 [1] : vector<16x32xf32> to vector<16xf32>
    %42 = vector.shape_cast %41 : vector<16xf32> to vector<16x1xf32>
    %cst_18 = arith.constant 0.176776692 : f32
    %43 = vector.broadcast %cst_18 : f32 to vector<16x1xf32>
    %44 = arith.mulf %42, %43 : vector<16x1xf32>
    %45 = arith.mulf %12, %16 : vector<16x32xf32>
    %cst_19 = arith.constant dense<0.000000e+00> : vector<16xf32>
    %46 = vector.multi_reduction <add>, %45, %cst_19 [1] : vector<16x32xf32> to vector<16xf32>
    %47 = vector.shape_cast %46 : vector<16xf32> to vector<16x1xf32>
    %cst_20 = arith.constant 0.176776692 : f32
    %48 = vector.broadcast %cst_20 : f32 to vector<16x1xf32>
    %49 = arith.mulf %47, %48 : vector<16x1xf32>
    %50 = arith.mulf %13, %14 : vector<16x32xf32>
    %cst_21 = arith.constant dense<0.000000e+00> : vector<16xf32>
    %51 = vector.multi_reduction <add>, %50, %cst_21 [1] : vector<16x32xf32> to vector<16xf32>
    %52 = vector.shape_cast %51 : vector<16xf32> to vector<16x1xf32>
    %cst_22 = arith.constant 0.176776692 : f32
    %53 = vector.broadcast %cst_22 : f32 to vector<16x1xf32>
    %54 = arith.mulf %52, %53 : vector<16x1xf32>
    %55 = arith.mulf %13, %15 : vector<16x32xf32>
    %cst_23 = arith.constant dense<0.000000e+00> : vector<16xf32>
    %56 = vector.multi_reduction <add>, %55, %cst_23 [1] : vector<16x32xf32> to vector<16xf32>
    %57 = vector.shape_cast %56 : vector<16xf32> to vector<16x1xf32>
    %cst_24 = arith.constant 0.176776692 : f32
    %58 = vector.broadcast %cst_24 : f32 to vector<16x1xf32>
    %59 = arith.mulf %57, %58 : vector<16x1xf32>
    %60 = arith.mulf %13, %16 : vector<16x32xf32>
    %cst_25 = arith.constant dense<0.000000e+00> : vector<16xf32>
    %61 = vector.multi_reduction <add>, %60, %cst_25 [1] : vector<16x32xf32> to vector<16xf32>
    %62 = vector.shape_cast %61 : vector<16xf32> to vector<16x1xf32>
    %cst_26 = arith.constant 0.176776692 : f32
    %63 = vector.broadcast %cst_26 : f32 to vector<16x1xf32>
    %64 = arith.mulf %62, %63 : vector<16x1xf32>
    %cst_27 = arith.constant 0.000000e+00 : f32
    %65 = vector.broadcast %cst_27 : f32 to vector<16x1xf32>
    %cst_28 = arith.constant 0.000000e+00 : f32
    %66 = vector.broadcast %cst_28 : f32 to vector<16x1xf32>
    %cst_29 = arith.constant 0.000000e+00 : f32
    %67 = vector.broadcast %cst_29 : f32 to vector<16x1xf32>
    %68 = arith.maximumf %29, %34 : vector<16x1xf32>
    %69 = arith.maximumf %24, %68 : vector<16x1xf32>
    %70 = arith.subf %24, %69 : vector<16x1xf32>
    %71 = math.exp %70 : vector<16x1xf32>
    %72 = arith.subf %29, %69 : vector<16x1xf32>
    %73 = math.exp %72 : vector<16x1xf32>
    %74 = arith.subf %34, %69 : vector<16x1xf32>
    %75 = math.exp %74 : vector<16x1xf32>
    %76 = arith.addf %71, %73 : vector<16x1xf32>
    %77 = arith.addf %76, %75 : vector<16x1xf32>
    %78 = tpu.reciprocal %77 : vector<16x1xf32> -> vector<16x1xf32>
    %79 = arith.mulf %71, %78 : vector<16x1xf32>
    %80 = arith.addf %65, %79 : vector<16x1xf32>
    %81 = arith.mulf %73, %78 : vector<16x1xf32>
    %82 = arith.addf %66, %81 : vector<16x1xf32>
    %83 = arith.mulf %75, %78 : vector<16x1xf32>
    %84 = arith.addf %67, %83 : vector<16x1xf32>
    %85 = arith.maximumf %44, %49 : vector<16x1xf32>
    %86 = arith.maximumf %39, %85 : vector<16x1xf32>
    %87 = arith.subf %39, %86 : vector<16x1xf32>
    %88 = math.exp %87 : vector<16x1xf32>
    %89 = arith.subf %44, %86 : vector<16x1xf32>
    %90 = math.exp %89 : vector<16x1xf32>
    %91 = arith.subf %49, %86 : vector<16x1xf32>
    %92 = math.exp %91 : vector<16x1xf32>
    %93 = arith.addf %88, %90 : vector<16x1xf32>
    %94 = arith.addf %93, %92 : vector<16x1xf32>
    %95 = tpu.reciprocal %94 : vector<16x1xf32> -> vector<16x1xf32>
    %96 = arith.mulf %88, %95 : vector<16x1xf32>
    %97 = arith.addf %80, %96 : vector<16x1xf32>
    %98 = arith.mulf %90, %95 : vector<16x1xf32>
    %99 = arith.addf %82, %98 : vector<16x1xf32>
    %100 = arith.mulf %92, %95 : vector<16x1xf32>
    %101 = arith.addf %84, %100 : vector<16x1xf32>
    %102 = arith.maximumf %59, %64 : vector<16x1xf32>
    %103 = arith.maximumf %54, %102 : vector<16x1xf32>
    %104 = arith.subf %54, %103 : vector<16x1xf32>
    %105 = math.exp %104 : vector<16x1xf32>
    %106 = arith.subf %59, %103 : vector<16x1xf32>
    %107 = math.exp %106 : vector<16x1xf32>
    %108 = arith.subf %64, %103 : vector<16x1xf32>
    %109 = math.exp %108 : vector<16x1xf32>
    %110 = arith.addf %105, %107 : vector<16x1xf32>
    %111 = arith.addf %110, %109 : vector<16x1xf32>
    %112 = tpu.reciprocal %111 : vector<16x1xf32> -> vector<16x1xf32>
    %113 = arith.mulf %105, %112 : vector<16x1xf32>
    %114 = arith.addf %97, %113 : vector<16x1xf32>
    %115 = arith.mulf %107, %112 : vector<16x1xf32>
    %116 = arith.addf %99, %115 : vector<16x1xf32>
    %117 = arith.mulf %109, %112 : vector<16x1xf32>
    %118 = arith.addf %101, %117 : vector<16x1xf32>
    %119 = vector.broadcast %114 : vector<16x1xf32> to vector<16x32xf32>
    %120 = arith.mulf %119, %17 : vector<16x32xf32>
    %121 = vector.broadcast %116 : vector<16x1xf32> to vector<16x32xf32>
    %122 = arith.mulf %121, %18 : vector<16x32xf32>
    %123 = arith.addf %120, %122 : vector<16x32xf32>
    %124 = vector.broadcast %118 : vector<16x1xf32> to vector<16x32xf32>
    %125 = arith.mulf %124, %19 : vector<16x32xf32>
    %126 = arith.addf %123, %125 : vector<16x32xf32>
    %cst_30 = arith.constant dense<0.000000e+00> : vector<16xf32>
    %127 = vector.multi_reduction <add>, %126, %cst_30 [1] : vector<16x32xf32> to vector<16xf32>
    %128 = vector.shape_cast %127 : vector<16xf32> to vector<16x1xf32>
    %cst_31 = arith.constant 3.200000e+01 : f32
    %129 = vector.broadcast %cst_31 : f32 to vector<16x1xf32>
    %130 = arith.divf %128, %129 : vector<16x1xf32>
    %131 = vector.broadcast %130 : vector<16x1xf32> to vector<16x32xf32>
    %132 = arith.subf %126, %131 : vector<16x32xf32>
    %133 = arith.mulf %132, %132 : vector<16x32xf32>
    %cst_32 = arith.constant dense<0.000000e+00> : vector<16xf32>
    %134 = vector.multi_reduction <add>, %133, %cst_32 [1] : vector<16x32xf32> to vector<16xf32>
    %135 = vector.shape_cast %134 : vector<16xf32> to vector<16x1xf32>
    %cst_33 = arith.constant 3.200000e+01 : f32
    %136 = vector.broadcast %cst_33 : f32 to vector<16x1xf32>
    %137 = arith.divf %135, %136 : vector<16x1xf32>
    %cst_34 = arith.constant 9.99999974E-6 : f32
    %138 = vector.broadcast %cst_34 : f32 to vector<16x1xf32>
    %139 = arith.addf %137, %138 : vector<16x1xf32>
    %140 = math.rsqrt %139 : vector<16x1xf32>
    %c0_35 = arith.constant 0 : index
    %c0_36 = arith.constant 0 : index
    %141 = vector.load %arg5[%c0_35, %c0_36] : memref<1x32xf32, #tpu.memory_space<vmem>>, vector<1x32xf32>
    %142 = vector.broadcast %141 : vector<1x32xf32> to vector<16x32xf32>
    %143 = arith.mulf %132, %142 : vector<16x32xf32>
    %cst_37 = arith.constant dense<0.000000e+00> : vector<16xf32>
    %144 = vector.multi_reduction <add>, %143, %cst_37 [1] : vector<16x32xf32> to vector<16xf32>
    %145 = vector.shape_cast %144 : vector<16xf32> to vector<16x1xf32>
    %146 = arith.mulf %140, %145 : vector<16x1xf32>
    %c0_38 = arith.constant 0 : index
    %c0_39 = arith.constant 0 : index
    %147 = vector.load %arg6[%c0_38, %c0_39] : memref<1x1xf32, #tpu.memory_space<vmem>>, vector<1x1xf32>
    %148 = vector.broadcast %147 : vector<1x1xf32> to vector<16x1xf32>
    %149 = arith.addf %146, %148 : vector<16x1xf32>
    %c0_40 = arith.constant 0 : index
    %c0_41 = arith.constant 0 : index
    %150 = vector.load %arg7[%c0_40, %c0_41] : memref<16x1xf32, #tpu.memory_space<vmem>>, vector<16x1xf32>
    tpu.vector_store %arg7[%c0_40, %c0_41], %149 {strides = array<i32>} : memref<16x1xf32, #tpu.memory_space<vmem>>, vector<16x1xf32>,
    return
  }
  func.func @transform_0(%arg0: i32) -> (i32, i32) {
    %c0_i32 = arith.constant 0 : i32
    %c0_i32_0 = arith.constant 0 : i32
    return %arg0, %c0_i32 : i32, i32
  }
  func.func @transform_1(%arg0: i32) -> (i32, i32) {
    %c0_i32 = arith.constant 0 : i32
    %c0_i32_0 = arith.constant 0 : i32
    %c0_i32_1 = arith.constant 0 : i32
    return %c0_i32, %c0_i32_0 : i32, i32
  }
  func.func @transform_2(%arg0: i32) -> (i32, i32) {
    %c0_i32 = arith.constant 0 : i32
    %c0_i32_0 = arith.constant 0 : i32
    %c0_i32_1 = arith.constant 0 : i32
    return %c0_i32, %c0_i32_0 : i32, i32
  }
  func.func @transform_3(%arg0: i32) -> (i32, i32) {
    %c0_i32 = arith.constant 0 : i32
    %c0_i32_0 = arith.constant 0 : i32
    %c0_i32_1 = arith.constant 0 : i32
    return %c0_i32, %c0_i32_0 : i32, i32
  }
  func.func @transform_4(%arg0: i32) -> (i32, i32) {
    %c0_i32 = arith.constant 0 : i32
    %c0_i32_0 = arith.constant 0 : i32
    %c0_i32_1 = arith.constant 0 : i32
    return %c0_i32, %c0_i32_0 : i32, i32
  }
  func.func @transform_5(%arg0: i32) -> (i32, i32) {
    %c0_i32 = arith.constant 0 : i32
    %c0_i32_0 = arith.constant 0 : i32
    %c0_i32_1 = arith.constant 0 : i32
    return %c0_i32, %c0_i32_0 : i32, i32
  }
  func.func @transform_6(%arg0: i32) -> (i32, i32) {
    %c0_i32 = arith.constant 0 : i32
    %c0_i32_0 = arith.constant 0 : i32
    return %arg0, %c0_i32 : i32, i32
  }
}

</mosaic_0001>

<llo_original>
// kernel: mymodel_forward.1
$region0: #{mymodel_forward.1}
  #allocation0 [shape = 'u32[]', space=smem, size = 0x4, offset = 0x4, fixed_abs, tag = 'smem constant byte address 0x4 - core index']
  #allocation1 [shape = 'u32[144,128]{1,0:T(1,128)}', space=vmem, size = 0x12000, scoped, tag = 'internal scratch']
  #allocation2 [shape = 'f32[1,1]{1,0:T(1,128)S(1)}', space=vmem, size = 0x200, scoped, tag = 'scoped memory for mymodel_forward.1']
  %s0 = inlined_call_operand.vmem [shape: bf16[16,128], index: 0, kind: input, shape index: {}]
  %s1 = inlined_call_operand.vmem [shape: f32[128,96], index: 1, kind: input, shape index: {}]
  %s2 = inlined_call_operand.vmem [shape: f32[1,96], index: 2, kind: input, shape index: {}]
  %s3 = inlined_call_operand.hbm [shape: f32[96,288], index: 3, kind: input, shape index: {}]
  %s4 = inlined_call_operand.vmem [shape: f32[1,32], index: 4, kind: input, shape index: {}]
  %s5 = inlined_call_operand.<no memory space> [shape: f32[1,1], index: 5, kind: input, shape index: {}]
  %s6 = inlined_call_operand.vmem [shape: f32[16,1], index: 6, kind: output, shape index: {}]
  %s7 = sld [smem:[#allocation0]]
  $region38: #{mymodel_forward.1} parent=0
    _
  %s9 = ssub.s32 1, %s7
  %s10 = scalar_select 0, %s9, %s7
  %v11 = vstv %s5
  %12 = vst [vmem:[#allocation2] sm:$0x1] %v11
  $region1: #{mymodel_forward.1} parent=0
    #allocation3 [shape = 'u8[147456]{0}', space=vmem, size = 0x24000, scoped, tag = 'input window, operand 3, single buffered']
    #allocation4 [shape = 's32[1]{0}', space=sflag, size = 0x4, scoped, tag = 'scoped memory for mymodel_forward.1']
    %13 = vsyncpa [#allocation4], 0
    // Predicated region
    $region2: #{mymodel_forward.1} parent=1 // pred_check
      _
    $region3: #{mymodel_forward.1} parent=1 // pred_check_branch
      %15 = sbr.rel (0) target = $region5
    $region4: #{mymodel_forward.1} parent=1 // pred_region
      _
    $region5: #{mymodel_forward.1} parent=1 // pred_fallthru
      _
    // Predicated region
    $region6: #{mymodel_forward.1} parent=1 // pred_check
      _
    $region7: #{mymodel_forward.1} parent=1 // pred_check_branch
      %17 = sbr.rel (0) target = $region9
    $region8: #{mymodel_forward.1} parent=1 // pred_region
      _
    $region9: #{mymodel_forward.1} parent=1 // pred_fallthru
      _
    // Predicated region
    $region10: #{mymodel_forward.1} parent=1 // pred_check
      _
    $region11: #{mymodel_forward.1} parent=1 // pred_check_branch
      %19 = sbr.rel (0) target = $region13
    $region12: #{mymodel_forward.1} parent=1 // pred_region
      _
    $region13: #{mymodel_forward.1} parent=1 // pred_fallthru
      _
    // Predicated region
    $region14: #{mymodel_forward.1} parent=1 // pred_check
      _
    $region15: #{mymodel_forward.1} parent=1 // pred_check_branch
      %21 = sbr.rel (0) target = $region17
    $region16: #{mymodel_forward.1} parent=1 // pred_region
      %s23 = ssub.s32 4608, 4608
      %24 = vsyncadd [#allocation4], %s23
      %s25 = sshll.u32 [#allocation3], 4
      %s26 = int_to_ptr.vmem [resolvable:$true] %s25
      %31 = dma.hbm_to_vmem [thread:$0]  %s3, 4608, %s26, [#allocation4], 384, 384, 24
    $region17: #{mymodel_forward.1} parent=1 // pred_fallthru
      _
    // Predicated region
    $region18: #{mymodel_forward.1} parent=1 // pred_check
      _
    $region19: #{mymodel_forward.1} parent=1 // pred_check_branch
      %33 = sbr.rel (0) target = $region21
    $region20: #{mymodel_forward.1} parent=1 // pred_region
      _
    $region21: #{mymodel_forward.1} parent=1 // pred_fallthru
      _
    // Predicated region
    $region22: #{mymodel_forward.1} parent=1 // pred_check
      _
    $region23: #{mymodel_forward.1} parent=1 // pred_check_branch
      %35 = sbr.rel (0) target = $region25
    $region24: #{mymodel_forward.1} parent=1 // pred_region
      _
    $region25: #{mymodel_forward.1} parent=1 // pred_fallthru
      _
    // Predicated region
    $region26: #{mymodel_forward.1} parent=1 // pred_check
      _
    $region27: #{mymodel_forward.1} parent=1 // pred_check_branch
      %37 = sbr.rel (0) target = $region29
    $region28: #{mymodel_forward.1} parent=1 // pred_region
      %38 = dma.done [#allocation4], 4608
    $region29: #{mymodel_forward.1} parent=1 // pred_fallthru
      _
    %v39 = vld [vmem:[%s0] sm:$0xf]
    %v40 = vld [vmem:[%s0 + $0x4] sm:$0xf]
    %v41 = vunpack.c.l.bf16 %v39
    %v42 = vunpack.c.l.bf16 %v40
    %v43 = vld [vmem:[%s1] sm:$0xff]
    %v44 = vld [vmem:[%s1 + $0x8] sm:$0xff]
    %v45 = vld [vmem:[%s1 + $0x10] sm:$0xff]
    %v46 = vld [vmem:[%s1 + $0x18] sm:$0xff]
    %v47 = vld [vmem:[%s1 + $0x20] sm:$0xff]
    %v48 = vld [vmem:[%s1 + $0x28] sm:$0xff]
    %v49 = vld [vmem:[%s1 + $0x30] sm:$0xff]
    %v50 = vld [vmem:[%s1 + $0x38] sm:$0xff]
    %v51 = vld [vmem:[%s1 + $0x40] sm:$0xff]
    %v52 = vld [vmem:[%s1 + $0x48] sm:$0xff]
    %v53 = vld [vmem:[%s1 + $0x50] sm:$0xff]
    %v54 = vld [vmem:[%s1 + $0x58] sm:$0xff]
    %v55 = vld [vmem:[%s1 + $0x60] sm:$0xff]
    %v56 = vld [vmem:[%s1 + $0x68] sm:$0xff]
    %v57 = vld [vmem:[%s1 + $0x70] sm:$0xff]
    %v58 = vld [vmem:[%s1 + $0x78] sm:$0xff]
    %v59 = vld [vmem:[%s2] sm:$0x1]
    %v61 = vlaneseq
    %v62 = vshrl.u32 %v61, 7
    %v63 = vsub.s32 0, %v62
    %v64 = vrot.slane %v59, %v63
    %66 = vmatprep.subr.mxu0 0.0
    %67 = vmatpush1.msra.mxu0 %v43
    %68 = vmatprep.subr.mxu0 0.0
    %69 = vmatpush1.msra.mxu0 %v44
    %70 = vmatprep.subr.mxu0 0.0
    %71 = vmatpush1.msra.mxu0 %v45
    %72 = vmatprep.subr.mxu0 0.0
    %73 = vmatpush1.msra.mxu0 %v46
    %74 = vmatprep.subr.mxu0 0.0
    %75 = vmatpush1.msra.mxu0 %v47
    %76 = vmatprep.subr.mxu0 0.0
    %77 = vmatpush1.msra.mxu0 %v48
    %78 = vmatprep.subr.mxu0 0.0
    %79 = vmatpush1.msra.mxu0 %v49
    %80 = vmatprep.subr.mxu0 0.0
    %81 = vmatpush1.msra.mxu0 %v50
    %82 = vmatprep.subr.mxu0 0.0
    %83 = vmatpush1.msra.mxu0 %v51
    %84 = vmatprep.subr.mxu0 0.0
    %85 = vmatpush1.msra.mxu0 %v52
    %86 = vmatprep.subr.mxu0 0.0
    %87 = vmatpush1.msra.mxu0 %v53
    %88 = vmatprep.subr.mxu0 0.0
    %89 = vmatpush1.msra.mxu0 %v54
    %90 = vmatprep.subr.mxu0 0.0
    %91 = vmatpush1.msra.mxu0 %v55
    %92 = vmatprep.subr.mxu0 0.0
    %93 = vmatpush1.msra.mxu0 %v56
    %94 = vmatprep.subr.mxu0 0.0
    %95 = vmatpush1.msra.mxu0 %v57
    %96 = vmatprep.subr.mxu0 0.0
    %97 = vmatpush1.msra.mxu0 %v58
    %98 = vmatprep.subr.mxu0 0.0
    %99 = vmatpush1.msra.mxu0 0.0
    %100 = vmatprep.subr.mxu0 0.0
    %101 = vmatpush1.msra.mxu0 0.0
    %102 = vmatprep.subr.mxu0 0.0
    %103 = vmatpush1.msra.mxu0 0.0
    %104 = vmatprep.subr.mxu0 0.0
    %105 = vmatpush1.msra.mxu0 0.0
    %106 = vmatprep.subr.mxu0 0.0
    %107 = vmatpush1.msra.mxu0 0.0
    %108 = vmatprep.subr.mxu0 0.0
    %109 = vmatpush1.msra.mxu0 0.0
    %110 = vmatprep.subr.mxu0 0.0
    %111 = vmatpush1.msra.mxu0 0.0
    %112 = vmatprep.subr.mxu0 0.0
    %113 = vmatpush1.msra.mxu0 0.0
    %114 = vmatprep.subr.mxu0 0.0
    %115 = vmatpush1.msra.mxu0 0.0
    %116 = vmatprep.subr.mxu0 0.0
    %117 = vmatpush1.msra.mxu0 0.0
    %118 = vmatprep.subr.mxu0 0.0
    %119 = vmatpush1.msra.mxu0 0.0
    %120 = vmatprep.subr.mxu0 0.0
    %121 = vmatpush1.msra.mxu0 0.0
    %122 = vmatprep.subr.mxu0 0.0
    %123 = vmatpush1.msra.mxu0 0.0
    %124 = vmatprep.subr.mxu0 0.0
    %125 = vmatpush1.msra.mxu0 0.0
    %126 = vmatprep.subr.mxu0 0.0
    %127 = vmatpush1.msra.mxu0 0.0
    %128 = vmatprep.subr.mxu0 0.0
    %129 = vmatpush1.msra.mxu0 0.0
    %130 = vmatprep.mubr.f32.mxu0 0.0
    %131 = vmatmul.mubr.f32.gmra.mrb[0].mxu0 %v41
    %v132 = vpop.f32.mrb[0].mxu0
    %v133 = vadd.f32 %v64, %v132
    %v134 = vpop.f32.mrb[0].mxu0
    %135 = vmatprep.mubr.f32.mxu0 0.0
    %136 = vmatmul.mubr.f32.gmra.mrb[0].mxu0 %v42
    %v137 = vpop.f32.mrb[0].mxu0
    %v138 = vadd.f32 %v64, %v137
    %v139 = vpop.f32.mrb[0].mxu0
    %140 = vdwg.mxu0
    %v141 = vmax.f32 %v133, 0.0
    %v142 = vmax.f32 %v138, 0.0
    %v143 = vld [vmem:[#allocation3] sm:$0xff]
    %v144 = vld [vmem:[#allocation3 + $0x8] sm:$0xff]
    %v145 = vld [vmem:[#allocation3 + $0x10] sm:$0xff]
    %v146 = vld [vmem:[#allocation3 + $0x18] sm:$0xff]
    %v147 = vld [vmem:[#allocation3 + $0x20] sm:$0xff]
    %v148 = vld [vmem:[#allocation3 + $0x28] sm:$0xff]
    %v149 = vld [vmem:[#allocation3 + $0x30] sm:$0xff]
    %v150 = vld [vmem:[#allocation3 + $0x38] sm:$0xff]
    %v151 = vld [vmem:[#allocation3 + $0x40] sm:$0xff]
    %v152 = vld [vmem:[#allocation3 + $0x48] sm:$0xff]
    %v153 = vld [vmem:[#allocation3 + $0x50] sm:$0xff]
    %v154 = vld [vmem:[#allocation3 + $0x58] sm:$0xff]
    %v155 = vld [vmem:[#allocation3 + $0x60] sm:$0xff]
    %v156 = vld [vmem:[#allocation3 + $0x68] sm:$0xff]
    %v157 = vld [vmem:[#allocation3 + $0x70] sm:$0xff]
    %v158 = vld [vmem:[#allocation3 + $0x78] sm:$0xff]
    %v159 = vld [vmem:[#allocation3 + $0x80] sm:$0xff]
    %v160 = vld [vmem:[#allocation3 + $0x88] sm:$0xff]
    %v161 = vld [vmem:[#allocation3 + $0x90] sm:$0xff]
    %v162 = vld [vmem:[#allocation3 + $0x98] sm:$0xff]
    %v163 = vld [vmem:[#allocation3 + $0xa0] sm:$0xff]
    %v164 = vld [vmem:[#allocation3 + $0xa8] sm:$0xff]
    %v165 = vld [vmem:[#allocation3 + $0xb0] sm:$0xff]
    %v166 = vld [vmem:[#allocation3 + $0xb8] sm:$0xff]
    %v167 = vld [vmem:[#allocation3 + $0xc0] sm:$0xff]
    %v168 = vld [vmem:[#allocation3 + $0xc8] sm:$0xff]
    %v169 = vld [vmem:[#allocation3 + $0xd0] sm:$0xff]
    %v170 = vld [vmem:[#allocation3 + $0xd8] sm:$0xff]
    %v171 = vld [vmem:[#allocation3 + $0xe0] sm:$0xff]
    %v172 = vld [vmem:[#allocation3 + $0xe8] sm:$0xff]
    %v173 = vld [vmem:[#allocation3 + $0xf0] sm:$0xff]
    %v174 = vld [vmem:[#allocation3 + $0xf8] sm:$0xff]
    %v175 = vld [vmem:[#allocation3 + $0x100] sm:$0xff]
    %v176 = vld [vmem:[#allocation3 + $0x108] sm:$0xff]
    %v177 = vld [vmem:[#allocation3 + $0x110] sm:$0xff]
    %v178 = vld [vmem:[#allocation3 + $0x118] sm:$0xff]
    %vm179 = vcmask 785408
    %v181 = vsel %vm179, %v141, 0
    %v184 = vsel %vm179, %v142, 0
    %186 = vmatprep.subr.mxu0 %v144
    %187 = vmatpush1.msra.mxu0 %v143
    %188 = vmatprep.subr.mxu0 %v147
    %189 = vmatpush1.msra.mxu0 %v146
    %190 = vmatprep.subr.mxu0 %v150
    %191 = vmatpush1.msra.mxu0 %v149
    %192 = vmatprep.subr.mxu0 %v153
    %193 = vmatpush1.msra.mxu0 %v152
    %194 = vmatprep.subr.mxu0 %v156
    %195 = vmatpush1.msra.mxu0 %v155
    %196 = vmatprep.subr.mxu0 %v159
    %197 = vmatpush1.msra.mxu0 %v158
    %198 = vmatprep.subr.mxu0 %v162
    %199 = vmatpush1.msra.mxu0 %v161
    %200 = vmatprep.subr.mxu0 %v165
    %201 = vmatpush1.msra.mxu0 %v164
    %202 = vmatprep.subr.mxu0 %v168
    %203 = vmatpush1.msra.mxu0 %v167
    %204 = vmatprep.subr.mxu0 %v171
    %205 = vmatpush1.msra.mxu0 %v170
    %206 = vmatprep.subr.mxu0 %v174
    %207 = vmatpush1.msra.mxu0 %v173
    %208 = vmatprep.subr.mxu0 %v177
    %209 = vmatpush1.msra.mxu0 %v176
    %210 = vmatprep.subr.mxu0 0.0
    %211 = vmatpush1.msra.mxu0 0.0
    %212 = vmatprep.subr.mxu0 0.0
    %213 = vmatpush1.msra.mxu0 0.0
    %214 = vmatprep.subr.mxu0 0.0
    %215 = vmatpush1.msra.mxu0 0.0
    %216 = vmatprep.subr.mxu0 0.0
    %217 = vmatpush1.msra.mxu0 0.0
    %218 = vmatprep.subr.mxu0 0.0
    %219 = vmatpush1.msra.mxu0 0.0
    %220 = vmatprep.subr.mxu0 0.0
    %221 = vmatpush1.msra.mxu0 0.0
    %222 = vmatprep.subr.mxu0 0.0
    %223 = vmatpush1.msra.mxu0 0.0
    %224 = vmatprep.subr.mxu0 0.0
    %225 = vmatpush1.msra.mxu0 0.0
    %226 = vmatprep.subr.mxu0 0.0
    %227 = vmatpush1.msra.mxu0 0.0
    %228 = vmatprep.subr.mxu0 0.0
    %229 = vmatpush1.msra.mxu0 0.0
    %230 = vmatprep.subr.mxu0 0.0
    %231 = vmatpush1.msra.mxu0 0.0
    %232 = vmatprep.subr.mxu0 0.0
    %233 = vmatpush1.msra.mxu0 0.0
    %234 = vmatprep.subr.mxu0 0.0
    %235 = vmatpush1.msra.mxu0 0.0
    %236 = vmatprep.subr.mxu0 0.0
    %237 = vmatpush1.msra.mxu0 0.0
    %238 = vmatprep.subr.mxu0 0.0
    %239 = vmatpush1.msra.mxu0 0.0
    %240 = vmatprep.subr.mxu0 0.0
    %241 = vmatpush1.msra.mxu0 0.0
    %242 = vmatprep.subr.mxu0 0.0
    %243 = vmatpush1.msra.mxu0 0.0
    %244 = vmatprep.subr.mxu0 0.0
    %245 = vmatpush1.msra.mxu0 0.0
    %246 = vmatprep.subr.mxu0 0.0
    %247 = vmatpush1.msra.mxu0 0.0
    %248 = vmatprep.subr.mxu0 0.0
    %249 = vmatpush1.msra.mxu0 0.0
    %250 = vmatprep.mubr.f32.mxu0 0.0
    %251 = vmatmul.mubr.f32.gmra.mrb[0].mxu0 %v181
    %v252 = vpop.f32.mrb[0].mxu0
    %v253 = vadd.f32 0.0, %v252
    %v254 = vpop.f32.mrb[0].mxu0
    %v255 = vadd.f32 0.0, %v254
    %256 = vmatprep.mubr.f32.mxu0 0.0
    %257 = vmatmul.mubr.f32.gmra.mrb[0].mxu0 %v184
    %v258 = vpop.f32.mrb[0].mxu0
    %v259 = vadd.f32 0.0, %v258
    %v260 = vpop.f32.mrb[0].mxu0
    %v261 = vadd.f32 0.0, %v260
    %262 = vdwg.mxu0
    %263 = vmatprep.subr.mxu0 0.0
    %264 = vmatpush1.msra.mxu0 %v145
    %265 = vmatprep.subr.mxu0 0.0
    %266 = vmatpush1.msra.mxu0 %v148
    %267 = vmatprep.subr.mxu0 0.0
    %268 = vmatpush1.msra.mxu0 %v151
    %269 = vmatprep.subr.mxu0 0.0
    %270 = vmatpush1.msra.mxu0 %v154
    %271 = vmatprep.subr.mxu0 0.0
    %272 = vmatpush1.msra.mxu0 %v157
    %273 = vmatprep.subr.mxu0 0.0
    %274 = vmatpush1.msra.mxu0 %v160
    %275 = vmatprep.subr.mxu0 0.0
    %276 = vmatpush1.msra.mxu0 %v163
    %277 = vmatprep.subr.mxu0 0.0
    %278 = vmatpush1.msra.mxu0 %v166
    %279 = vmatprep.subr.mxu0 0.0
    %280 = vmatpush1.msra.mxu0 %v169
    %281 = vmatprep.subr.mxu0 0.0
    %282 = vmatpush1.msra.mxu0 %v172
    %283 = vmatprep.subr.mxu0 0.0
    %284 = vmatpush1.msra.mxu0 %v175
    %285 = vmatprep.subr.mxu0 0.0
    %286 = vmatpush1.msra.mxu0 %v178
    %287 = vmatprep.subr.mxu0 0.0
    %288 = vmatpush1.msra.mxu0 0.0
    %289 = vmatprep.subr.mxu0 0.0
    %290 = vmatpush1.msra.mxu0 0.0
    %291 = vmatprep.subr.mxu0 0.0
    %292 = vmatpush1.msra.mxu0 0.0
    %293 = vmatprep.subr.mxu0 0.0
    %294 = vmatpush1.msra.mxu0 0.0
    %295 = vmatprep.subr.mxu0 0.0
    %296 = vmatpush1.msra.mxu0 0.0
    %297 = vmatprep.subr.mxu0 0.0
    %298 = vmatpush1.msra.mxu0 0.0
    %299 = vmatprep.subr.mxu0 0.0
    %300 = vmatpush1.msra.mxu0 0.0
    %301 = vmatprep.subr.mxu0 0.0
    %302 = vmatpush1.msra.mxu0 0.0
    %303 = vmatprep.subr.mxu0 0.0
    %304 = vmatpush1.msra.mxu0 0.0
    %305 = vmatprep.subr.mxu0 0.0
    %306 = vmatpush1.msra.mxu0 0.0
    %307 = vmatprep.subr.mxu0 0.0
    %308 = vmatpush1.msra.mxu0 0.0
    %309 = vmatprep.subr.mxu0 0.0
    %310 = vmatpush1.msra.mxu0 0.0
    %311 = vmatprep.subr.mxu0 0.0
    %312 = vmatpush1.msra.mxu0 0.0
    %313 = vmatprep.subr.mxu0 0.0
    %314 = vmatpush1.msra.mxu0 0.0
    %315 = vmatprep.subr.mxu0 0.0
    %316 = vmatpush1.msra.mxu0 0.0
    %317 = vmatprep.subr.mxu0 0.0
    %318 = vmatpush1.msra.mxu0 0.0
    %319 = vmatprep.subr.mxu0 0.0
    %320 = vmatpush1.msra.mxu0 0.0
    %321 = vmatprep.subr.mxu0 0.0
    %322 = vmatpush1.msra.mxu0 0.0
    %323 = vmatprep.subr.mxu0 0.0
    %324 = vmatpush1.msra.mxu0 0.0
    %325 = vmatprep.subr.mxu0 0.0
    %326 = vmatpush1.msra.mxu0 0.0
    %327 = vmatprep.mubr.f32.mxu0 0.0
    %328 = vmatmul.mubr.f32.gmra.mrb[0].mxu0 %v181
    %v329 = vpop.f32.mrb[0].mxu0
    %v330 = vadd.f32 0.0, %v329
    %v331 = vpop.f32.mrb[0].mxu0
    %332 = vmatprep.mubr.f32.mxu0 0.0
    %333 = vmatmul.mubr.f32.gmra.mrb[0].mxu0 %v184
    %v334 = vpop.f32.mrb[0].mxu0
    %v335 = vadd.f32 0.0, %v334
    %v336 = vpop.f32.mrb[0].mxu0
    %337 = vdwg.mxu0
    %340 = vrot.lane.b32.xlu0 %v253, 96
    %v341 = vpop.permute.xlu0 %340
    %342 = vrot.lane.b32.xlu0 %v259, 96
    %v343 = vpop.permute.xlu0 %342
    %v346 = vmul.f32 %v253, %v341
    %v347 = vmul.f32 %v259, %v343
    %vm348 = vcmask 261120
    %v349 = vsel %vm348, %v346, 0.0
    %350 = vadd.xlane.f32.xlu0 %v349
    %v351 = vpop.xlane.xlu0 %350
    %v352 = vsel %vm348, %v347, 0.0
    %353 = vadd.xlane.f32.xlu0 %v352
    %v354 = vpop.xlane.xlu0 %353
    %v355 = vmul.f32 %v351, 0.17677669
    %v356 = vmul.f32 %v354, 0.17677669
    %v357 = vmul.f32 %v253, %v255
    %v358 = vmul.f32 %v259, %v261
    %v359 = vsel %vm348, %v357, 0.0
    %360 = vadd.xlane.f32.xlu0 %v359
    %v361 = vpop.xlane.xlu0 %360
    %v362 = vsel %vm348, %v358, 0.0
    %363 = vadd.xlane.f32.xlu0 %v362
    %v364 = vpop.xlane.xlu0 %363
    %v365 = vmul.f32 %v361, 0.17677669
    %v366 = vmul.f32 %v364, 0.17677669
    %369 = vrot.lane.b32.xlu0 %v255, 32
    %v370 = vpop.permute.xlu0 %369
    %371 = vrot.lane.b32.xlu0 %v261, 32
    %v372 = vpop.permute.xlu0 %371
    %v375 = vmul.f32 %v253, %v370
    %v376 = vmul.f32 %v259, %v372
    %v377 = vsel %vm348, %v375, 0.0
    %378 = vadd.xlane.f32.xlu0 %v377
    %v379 = vpop.xlane.xlu0 %378
    %v380 = vsel %vm348, %v376, 0.0
    %381 = vadd.xlane.f32.xlu0 %v380
    %v382 = vpop.xlane.xlu0 %381
    %v383 = vmul.f32 %v379, 0.17677669
    %v384 = vmul.f32 %v382, 0.17677669
    %385 = vrot.lane.b32.xlu0 %v253, 64
    %v386 = vpop.permute.xlu0 %385
    %387 = vrot.lane.b32.xlu0 %v259, 64
    %v388 = vpop.permute.xlu0 %387
    %v391 = vmul.f32 %v253, %v386
    %v392 = vmul.f32 %v259, %v388
    %395 = vrot.lane.b32.xlu0 %v391, 32
    %v396 = vpop.permute.xlu0 %395
    %397 = vrot.lane.b32.xlu0 %v392, 32
    %v398 = vpop.permute.xlu0 %397
    %v401 = vsel %vm348, %v396, 0.0
    %402 = vadd.xlane.f32.xlu0 %v401
    %v403 = vpop.xlane.xlu0 %402
    %v404 = vsel %vm348, %v398, 0.0
    %405 = vadd.xlane.f32.xlu0 %v404
    %v406 = vpop.xlane.xlu0 %405
    %v407 = vmul.f32 %v403, 0.17677669
    %v408 = vmul.f32 %v406, 0.17677669
    %409 = vrot.lane.b32.xlu0 %v255, 96
    %v410 = vpop.permute.xlu0 %409
    %411 = vrot.lane.b32.xlu0 %v261, 96
    %v412 = vpop.permute.xlu0 %411
    %v415 = vmul.f32 %v253, %v410
    %v416 = vmul.f32 %v259, %v412
    %419 = vrot.lane.b32.xlu0 %v415, 32
    %v420 = vpop.permute.xlu0 %419
    %421 = vrot.lane.b32.xlu0 %v416, 32
    %v422 = vpop.permute.xlu0 %421
    %v425 = vsel %vm348, %v420, 0.0
    %426 = vadd.xlane.f32.xlu0 %v425
    %v427 = vpop.xlane.xlu0 %426
    %v428 = vsel %vm348, %v422, 0.0
    %429 = vadd.xlane.f32.xlu0 %v428
    %v430 = vpop.xlane.xlu0 %429
    %v431 = vmul.f32 %v427, 0.17677669
    %v432 = vmul.f32 %v430, 0.17677669
    %435 = vrot.lane.b32.xlu0 %v357, 32
    %v436 = vpop.permute.xlu0 %435
    %437 = vrot.lane.b32.xlu0 %v358, 32
    %v438 = vpop.permute.xlu0 %437
    %v441 = vsel %vm348, %v436, 0.0
    %442 = vadd.xlane.f32.xlu0 %v441
    %v443 = vpop.xlane.xlu0 %442
    %v444 = vsel %vm348, %v438, 0.0
    %445 = vadd.xlane.f32.xlu0 %v444
    %v446 = vpop.xlane.xlu0 %445
    %v447 = vmul.f32 %v443, 0.17677669
    %v448 = vmul.f32 %v446, 0.17677669
    %449 = vrot.lane.b32.xlu0 %v253, 32
    %v450 = vpop.permute.xlu0 %449
    %451 = vrot.lane.b32.xlu0 %v259, 32
    %v452 = vpop.permute.xlu0 %451
    %v455 = vmul.f32 %v255, %v450
    %v456 = vmul.f32 %v261, %v452
    %459 = vrot.lane.b32.xlu0 %v455, 64
    %v460 = vpop.permute.xlu0 %459
    %461 = vrot.lane.b32.xlu0 %v456, 64
    %v462 = vpop.permute.xlu0 %461
    %v465 = vsel %vm348, %v460, 0.0
    %466 = vadd.xlane.f32.xlu0 %v465
    %v467 = vpop.xlane.xlu0 %466
    %v468 = vsel %vm348, %v462, 0.0
    %469 = vadd.xlane.f32.xlu0 %v468
    %v470 = vpop.xlane.xlu0 %469
    %v471 = vmul.f32 %v467, 0.17677669
    %v472 = vmul.f32 %v470, 0.17677669
    %473 = vrot.lane.b32.xlu0 %v255, 64
    %v474 = vpop.permute.xlu0 %473
    %475 = vrot.lane.b32.xlu0 %v261, 64
    %v476 = vpop.permute.xlu0 %475
    %v479 = vmul.f32 %v255, %v474
    %v480 = vmul.f32 %v261, %v476
    %483 = vrot.lane.b32.xlu0 %v479, 64
    %v484 = vpop.permute.xlu0 %483
    %485 = vrot.lane.b32.xlu0 %v480, 64
    %v486 = vpop.permute.xlu0 %485
    %v489 = vsel %vm348, %v484, 0.0
    %490 = vadd.xlane.f32.xlu0 %v489
    %v491 = vpop.xlane.xlu0 %490
    %v492 = vsel %vm348, %v486, 0.0
    %493 = vadd.xlane.f32.xlu0 %v492
    %v494 = vpop.xlane.xlu0 %493
    %v495 = vmul.f32 %v491, 0.17677669
    %v496 = vmul.f32 %v494, 0.17677669
    %v497 = vmul.f32 %v255, %v410
    %v498 = vmul.f32 %v261, %v412
    %501 = vrot.lane.b32.xlu0 %v497, 64
    %v502 = vpop.permute.xlu0 %501
    %503 = vrot.lane.b32.xlu0 %v498, 64
    %v504 = vpop.permute.xlu0 %503
    %v507 = vsel %vm348, %v502, 0.0
    %508 = vadd.xlane.f32.xlu0 %v507
    %v509 = vpop.xlane.xlu0 %508
    %v510 = vsel %vm348, %v504, 0.0
    %511 = vadd.xlane.f32.xlu0 %v510
    %v512 = vpop.xlane.xlu0 %511
    %v513 = vmul.f32 %v509, 0.17677669
    %v514 = vmul.f32 %v512, 0.17677669
    %v515 = vmax.f32 %v365, %v383
    %v516 = vmax.f32 %v366, %v384
    %v517 = vmax.f32 %v355, %v515
    %v518 = vmax.f32 %v356, %v516
    %v519 = vsub.f32 %v355, %v517
    %v520 = vsub.f32 %v356, %v518
    %v521 = vmul.f32 %v519, 1.442695
    %v522 = vpow.pop %v521
    %v523 = vmul.f32 %v520, 1.442695
    %v524 = vpow.pop %v523
    %v525 = vsub.f32 %v365, %v517
    %v526 = vsub.f32 %v366, %v518
    %v527 = vmul.f32 %v525, 1.442695
    %v528 = vpow.pop %v527
    %v529 = vmul.f32 %v526, 1.442695
    %v530 = vpow.pop %v529
    %v531 = vsub.f32 %v383, %v517
    %v532 = vsub.f32 %v384, %v518
    %v533 = vmul.f32 %v531, 1.442695
    %v534 = vpow.pop %v533
    %v535 = vmul.f32 %v532, 1.442695
    %v536 = vpow.pop %v535
    %v537 = vadd.f32 %v522, %v528
    %v538 = vadd.f32 %v524, %v530
    %v539 = vadd.f32 %v537, %v534
    %v540 = vadd.f32 %v538, %v536
    %v541 = vrcp.pop %v539
    %v542 = vrcp.pop %v540
    %v543 = vmul.f32 %v522, %v541
    %v544 = vmul.f32 %v524, %v542
    %v545 = vadd.f32 %v543, 0.0
    %v546 = vadd.f32 %v544, 0.0
    %v547 = vmul.f32 %v528, %v541
    %v548 = vmul.f32 %v530, %v542
    %v549 = vadd.f32 %v547, 0.0
    %v550 = vadd.f32 %v548, 0.0
    %v551 = vmul.f32 %v534, %v541
    %v552 = vmul.f32 %v536, %v542
    %v553 = vadd.f32 %v551, 0.0
    %v554 = vadd.f32 %v552, 0.0
    %v555 = vmax.f32 %v431, %v447
    %v556 = vmax.f32 %v432, %v448
    %v557 = vmax.f32 %v407, %v555
    %v558 = vmax.f32 %v408, %v556
    %v559 = vsub.f32 %v407, %v557
    %v560 = vsub.f32 %v408, %v558
    %v561 = vmul.f32 %v559, 1.442695
    %v562 = vpow.pop %v561
    %v563 = vmul.f32 %v560, 1.442695
    %v564 = vpow.pop %v563
    %v565 = vsub.f32 %v431, %v557
    %v566 = vsub.f32 %v432, %v558
    %v567 = vmul.f32 %v565, 1.442695
    %v568 = vpow.pop %v567
    %v569 = vmul.f32 %v566, 1.442695
    %v570 = vpow.pop %v569
    %v571 = vsub.f32 %v447, %v557
    %v572 = vsub.f32 %v448, %v558
    %v573 = vmul.f32 %v571, 1.442695
    %v574 = vpow.pop %v573
    %v575 = vmul.f32 %v572, 1.442695
    %v576 = vpow.pop %v575
    %v577 = vadd.f32 %v562, %v568
    %v578 = vadd.f32 %v564, %v570
    %v579 = vadd.f32 %v577, %v574
    %v580 = vadd.f32 %v578, %v576
    %v581 = vrcp.pop %v579
    %v582 = vrcp.pop %v580
    %v583 = vmul.f32 %v562, %v581
    %v584 = vmul.f32 %v564, %v582
    %v585 = vadd.f32 %v545, %v583
    %v586 = vadd.f32 %v546, %v584
    %v587 = vmul.f32 %v568, %v581
    %v588 = vmul.f32 %v570, %v582
    %v589 = vadd.f32 %v549, %v587
    %v590 = vadd.f32 %v550, %v588
    %v591 = vmul.f32 %v574, %v581
    %v592 = vmul.f32 %v576, %v582
    %v593 = vadd.f32 %v553, %v591
    %v594 = vadd.f32 %v554, %v592
    %v595 = vmax.f32 %v495, %v513
    %v596 = vmax.f32 %v496, %v514
    %v597 = vmax.f32 %v471, %v595
    %v598 = vmax.f32 %v472, %v596
    %v599 = vsub.f32 %v471, %v597
    %v600 = vsub.f32 %v472, %v598
    %v601 = vmul.f32 %v599, 1.442695
    %v602 = vpow.pop %v601
    %v603 = vmul.f32 %v600, 1.442695
    %v604 = vpow.pop %v603
    %v605 = vsub.f32 %v495, %v597
    %v606 = vsub.f32 %v496, %v598
    %v607 = vmul.f32 %v605, 1.442695
    %v608 = vpow.pop %v607
    %v609 = vmul.f32 %v606, 1.442695
    %v610 = vpow.pop %v609
    %v611 = vsub.f32 %v513, %v597
    %v612 = vsub.f32 %v514, %v598
    %v613 = vmul.f32 %v611, 1.442695
    %v614 = vpow.pop %v613
    %v615 = vmul.f32 %v612, 1.442695
    %v616 = vpow.pop %v615
    %v617 = vadd.f32 %v602, %v608
    %v618 = vadd.f32 %v604, %v610
    %v619 = vadd.f32 %v617, %v614
    %v620 = vadd.f32 %v618, %v616
    %v621 = vrcp.pop %v619
    %v622 = vrcp.pop %v620
    %v623 = vmul.f32 %v602, %v621
    %v624 = vmul.f32 %v604, %v622
    %v625 = vadd.f32 %v585, %v623
    %v626 = vadd.f32 %v586, %v624
    %v627 = vmul.f32 %v608, %v621
    %v628 = vmul.f32 %v610, %v622
    %v629 = vadd.f32 %v589, %v627
    %v630 = vadd.f32 %v590, %v628
    %v631 = vmul.f32 %v614, %v621
    %v632 = vmul.f32 %v616, %v622
    %v633 = vadd.f32 %v593, %v631
    %v634 = vadd.f32 %v594, %v632
    %v635 = vmul.f32 %v625, %v253
    %v636 = vmul.f32 %v626, %v259
    %v637 = vmul.f32 %v629, %v255
    %v638 = vmul.f32 %v630, %v261
    %641 = vrot.lane.b32.xlu0 %v637, 32
    %v642 = vpop.permute.xlu0 %641
    %643 = vrot.lane.b32.xlu0 %v638, 32
    %v644 = vpop.permute.xlu0 %643
    %v647 = vadd.f32 %v635, %v642
    %v648 = vadd.f32 %v636, %v644
    %v649 = vmul.f32 %v633, %v330
    %v650 = vmul.f32 %v634, %v335
    %653 = vrot.lane.b32.xlu0 %v649, 64
    %v654 = vpop.permute.xlu0 %653
    %655 = vrot.lane.b32.xlu0 %v650, 64
    %v656 = vpop.permute.xlu0 %655
    %v659 = vadd.f32 %v647, %v654
    %v660 = vadd.f32 %v648, %v656
    %663 = vrot.lane.b32.xlu0 %v659, 64
    %v664 = vpop.permute.xlu0 %663
    %665 = vrot.lane.b32.xlu0 %v660, 64
    %v666 = vpop.permute.xlu0 %665
    %v669 = vsel %vm348, %v664, 0.0
    %670 = vadd.xlane.f32.xlu0 %v669
    %v671 = vpop.xlane.xlu0 %670
    %v672 = vsel %vm348, %v666, 0.0
    %673 = vadd.xlane.f32.xlu0 %v672
    %v674 = vpop.xlane.xlu0 %673
    %v675 = vrcp.pop 32.0
    %v676 = vmul.f32 %v671, %v675
    %v677 = vmul.f32 %v674, %v675
    %v678 = vsub.f32 %v659, %v676
    %v679 = vsub.f32 %v660, %v677
    %v680 = vmul.f32 %v678, %v678
    %v681 = vmul.f32 %v679, %v679
    %684 = vrot.lane.b32.xlu0 %v680, 64
    %v685 = vpop.permute.xlu0 %684
    %686 = vrot.lane.b32.xlu0 %v681, 64
    %v687 = vpop.permute.xlu0 %686
    %v690 = vsel %vm348, %v685, 0.0
    %691 = vadd.xlane.f32.xlu0 %v690
    %v692 = vpop.xlane.xlu0 %691
    %v693 = vsel %vm348, %v687, 0.0
    %694 = vadd.xlane.f32.xlu0 %v693
    %v695 = vpop.xlane.xlu0 %694
    %v696 = vmul.f32 %v692, %v675
    %v697 = vmul.f32 %v695, %v675
    %v698 = vadd.f32 %v696, 1e-05
    %v699 = vadd.f32 %v697, 1e-05
    %v700 = vrsqrt.pop %v698
    %v701 = vrsqrt.pop %v699
    %v702 = vld [vmem:[%s4] sm:$0x1]
    %v704 = vlaneseq
    %v705 = vshrl.u32 %v704, 7
    %v706 = vsub.s32 0, %v705
    %v707 = vrot.slane %v702, %v706
    %708 = vrot.lane.b32.xlu0 %v707, 64
    %v709 = vpop.permute.xlu0 %708
    %v711 = vmul.f32 %v678, %v709
    %v712 = vmul.f32 %v679, %v709
    %715 = vrot.lane.b32.xlu0 %v711, 64
    %v716 = vpop.permute.xlu0 %715
    %717 = vrot.lane.b32.xlu0 %v712, 64
    %v718 = vpop.permute.xlu0 %717
    %v721 = vsel %vm348, %v716, 0.0
    %722 = vadd.xlane.f32.xlu0 %v721
    %v723 = vpop.xlane.xlu0 %722
    %v724 = vsel %vm348, %v718, 0.0
    %725 = vadd.xlane.f32.xlu0 %v724
    %v726 = vpop.xlane.xlu0 %725
    %v727 = vmul.f32 %v700, %v723
    %v728 = vmul.f32 %v701, %v726
    %v729 = vld [vmem:[#allocation2] sm:$0x1]
    %v731 = vlaneseq
    %v732 = vshrl.u32 %v731, 7
    %v733 = vsub.s32 0, %v732
    %v734 = vrot.slane %v729, %v733
    %v736 = vadd.f32 %v727, %v734
    %v737 = vadd.f32 %v728, %v734
    %vm738 = vcmask 7168
    %739 = vst.msk [vmem:[%s6] sm:$0xff] %vm738, %v736
    %740 = vst.msk [vmem:[%s6 + $0x8] sm:$0xff] %vm738, %v737
    // Predicated region
    $region30: #{mymodel_forward.1} parent=1 // pred_check
      _
    $region31: #{mymodel_forward.1} parent=1 // pred_check_branch
      %742 = sbr.rel (0) target = $region33
    $region32: #{mymodel_forward.1} parent=1 // pred_region
      _
    $region33: #{mymodel_forward.1} parent=1 // pred_fallthru
      _
    // Predicated region
    $region34: #{mymodel_forward.1} parent=1 // pred_check
      _
    $region35: #{mymodel_forward.1} parent=1 // pred_check_branch
      %744 = sbr.rel (0) target = $region37
    $region36: #{mymodel_forward.1} parent=1 // pred_region
      _
    $region37: #{mymodel_forward.1} parent=1 // pred_fallthru
      _
    %745 = vsyncpa [#allocation4], 1

</llo_original>
